<compile_context>
chip_gen: v6e
topology: v6e:2x2x1
jax: 0.10.0
libtpu: 0.0.40
codegen_flags: <defaults>
</compile_context>

<pallas_src>
import functools

import jax
import jax.numpy as jnp
from jax.experimental import pallas as pl
from jax.experimental.pallas import tpu as pltpu


def _train_kernel(x_ref, halo_ref, w_ref, b_ref, noise_ref, out_ref, *,
                  c_out, c_out_pad, ksize):
    # x_ref:    (1, C_in, TL)            main input tile (lane axis = L)
    # halo_ref: (1, 1, C_in, K-1)        halo columns for the conv window
    # w_ref:    (K, 2*c_out_pad, C_in)   fused mean/log_var weights (0.5 folded)
    # b_ref:    (2*c_out_pad, 1)         fused bias (0.5 folded into log_var half)
    # noise_ref/out_ref: (1, C_out, TL)
    tl = out_ref.shape[2]
    x = x_ref[0]                                                  # (C_in, TL)
    if ksize > 1:
        xw = jnp.concatenate([x, halo_ref[0, 0]], axis=-1)        # (C_in, TL+K-1)
    else:
        xw = x
    # Conv1d as K accumulated matmuls (in-place MXU accumulation on v7x MRB).
    acc = jnp.dot(w_ref[0], xw[:, :tl], preferred_element_type=jnp.float32)
    for kk in range(1, ksize):
        acc = acc + jnp.dot(w_ref[kk], xw[:, kk:kk + tl],
                            preferred_element_type=jnp.float32)
    acc = acc + b_ref[...]                                        # lane broadcast
    mean = acc[:c_out]
    log_var_half = acc[c_out_pad:c_out_pad + c_out]               # sublane-aligned split
    # reparametrization trick: mean + eps * exp(0.5 * log_var)  (0.5 pre-folded)
    out_ref[0] = (mean + noise_ref[0] * jnp.exp(log_var_half)).astype(out_ref.dtype)


def _eval_kernel(x_ref, halo_ref, w_ref, b_ref, out_ref, *, c_out, ksize):
    # Eval fast path: mean head only (no log_var matmuls / exp / noise traffic).
    tl = out_ref.shape[2]
    x = x_ref[0]
    if ksize > 1:
        xw = jnp.concatenate([x, halo_ref[0, 0]], axis=-1)
    else:
        xw = x
    acc = jnp.dot(w_ref[0], xw[:, :tl], preferred_element_type=jnp.float32)
    for kk in range(1, ksize):
        acc = acc + jnp.dot(w_ref[kk], xw[:, kk:kk + tl],
                            preferred_element_type=jnp.float32)
    acc = acc + b_ref[...]
    out_ref[0] = acc[:c_out].astype(out_ref.dtype)


def _choose_tile_l(l_out, c_in, c_out_pad, k, training):
    """Lane-tile size from a VMEM budget (multiples of 128, capped at 8192)."""
    halo_w = max(k - 1, 1)
    # per-output-column f32 bytes: double-buffered streams (x, noise, out) plus
    # in-kernel intermediates (acc, shifted slices, exp), with generous margin.
    streams = c_in + (2 * c_out_pad if training else c_out_pad)
    interm = 2 * c_out_pad + c_in * (k + 1)
    per_col = 4 * (2 * streams + interm)
    budget = 12 * 1024 * 1024          # working-set target; fits every generation
    t = max(128, (budget // per_col) // 128 * 128)
    t = min(t, 8192)
    t = max(t, (halo_w + 127) // 128 * 128)   # keep the halo <= one tile
    if l_out <= t:
        return l_out                   # single full-extent tile
    return t


def cnn_reparametrization_trick(x, w_mean, b_mean, w_lv, b_lv, noise=None,
                                *, training=True):
    """Forward pass of CNN_Reparametrization_Trick.

    x:       (N, C_in, L) float32
    w_*:     (C_out, C_in, K) float32   (nn.Conv1d weight layout)
    b_*:     (C_out,) float32
    noise:   (N, C_out, L_out) float32  (torch.randn_like(mean)); required if training.

    Returns (N, C_out, L_out), matching PyTorch Conv1d (stride=1, no padding).
    """
    N, C_in, L = x.shape
    C_out, _, K = w_mean.shape
    L_out = L - K + 1
    assert L_out >= 1, "input length must be >= kernel_size"

    c_out_pad = -(-C_out // 8) * 8                      # sublane-aligned head split
    tile_l = _choose_tile_l(L_out, C_in, c_out_pad, K, training)
    num_l = pl.cdiv(L_out, tile_l)
    L_main = num_l * tile_l
    halo_w = max(K - 1, 1)

    x = x.astype(jnp.float32)

    # Main input tiles (lane axis = L) and tiny per-tile halo slabs; x is read
    # from HBM exactly once (no im2col materialization).
    need = L_main + halo_w
    x_ext = x if L >= need else jnp.pad(x, ((0, 0), (0, 0), (0, need - L)))
    x_main = x_ext[:, :, :L_main]
    if num_l == 1:
        x_halo = x_ext[:, :, L_main:L_main + halo_w][:, None]          # (N,1,C_in,halo)
    else:
        need2 = (num_l + 1) * tile_l
        if x_ext.shape[2] < need2:
            x_ext = jnp.pad(x_ext, ((0, 0), (0, 0), (0, need2 - x_ext.shape[2])))
        r = x_ext[:, :, :need2].reshape(N, C_in, num_l + 1, tile_l)
        x_halo = jnp.transpose(r[:, :, 1:, :halo_w], (0, 2, 1, 3))     # (N,num_l,C_in,halo)

    pad_rows = c_out_pad - C_out
    w_m = jnp.transpose(w_mean.astype(jnp.float32), (2, 0, 1))         # (K, C_out, C_in)
    if pad_rows:
        w_m = jnp.pad(w_m, ((0, 0), (0, pad_rows), (0, 0)))
    b_m = jnp.pad(b_mean.astype(jnp.float32), (0, pad_rows))

    x_spec = pl.BlockSpec((1, C_in, tile_l), lambda n, l: (n, 0, l))
    halo_spec = pl.BlockSpec((1, 1, C_in, halo_w), lambda n, l: (n, l, 0, 0))
    out_spec = pl.BlockSpec((1, C_out, tile_l), lambda n, l: (n, 0, l))
    cparams = pltpu.CompilerParams(
        dimension_semantics=("parallel", "parallel"),
        vmem_limit_bytes=32 * 1024 * 1024)

    if training:
        if noise is None:
            raise ValueError("training=True requires a noise tensor")
        # Fused weights: [mean | 0.5*log_var] heads; 0.5 folded so the kernel
        # computes exp(log_var_half) directly.
        w_l = jnp.transpose(w_lv.astype(jnp.float32), (2, 0, 1)) * 0.5
        if pad_rows:
            w_l = jnp.pad(w_l, ((0, 0), (0, pad_rows), (0, 0)))
        b_l = jnp.pad(0.5 * b_lv.astype(jnp.float32), (0, pad_rows))
        w_cat = jnp.concatenate([w_m, w_l], axis=1)                     # (K, 2*Cp, C_in)
        b_cat = jnp.concatenate([b_m, b_l], axis=0).reshape(2 * c_out_pad, 1)

        kernel = functools.partial(_train_kernel, c_out=C_out,
                                   c_out_pad=c_out_pad, ksize=K)
        in_specs = [
            x_spec,
            halo_spec,
            pl.BlockSpec((K, 2 * c_out_pad, C_in), lambda n, l: (0, 0, 0)),  # resident
            pl.BlockSpec((2 * c_out_pad, 1), lambda n, l: (0, 0)),           # resident
            pl.BlockSpec((1, C_out, tile_l), lambda n, l: (n, 0, l)),         # noise
        ]
        args = (x_main, x_halo, w_cat, b_cat, noise.astype(jnp.float32))
    else:
        kernel = functools.partial(_eval_kernel, c_out=C_out, ksize=K)
        in_specs = [
            x_spec,
            halo_spec,
            pl.BlockSpec((K, c_out_pad, C_in), lambda n, l: (0, 0, 0)),
            pl.BlockSpec((c_out_pad, 1), lambda n, l: (0, 0)),
        ]
        args = (x_main, x_halo, w_m, b_m.reshape(c_out_pad, 1))

    return pl.pallas_call(
        kernel,
        out_shape=jax.ShapeDtypeStruct((N, C_out, L_out), jnp.float32),
        grid=(N, num_l),
        in_specs=in_specs,
        out_specs=out_spec,
        compiler_params=cparams,
    )(*args)


def _reference(x, w_mean, b_mean, w_lv, b_lv, noise, training=True):
    # Pure-JAX reference of the PyTorch forward.
    dn = jax.lax.conv_dimension_numbers(x.shape, w_mean.shape, ("NCH", "OIH", "NCH"))
    mean = jax.lax.conv_general_dilated(x, w_mean, (1,), "VALID", dimension_numbers=dn)
    mean = mean + b_mean[None, :, None]
    if not training:
        return mean
    log_var = jax.lax.conv_general_dilated(x, w_lv, (1,), "VALID", dimension_numbers=dn)
    log_var = log_var + b_lv[None, :, None]
    return mean + noise * jnp.exp(0.5 * log_var)


if __name__ == "__main__":
    # Module kwargs implied: Conv1d(in_channels=4, out_channels=8, kernel_size=3)
    N, C_in, L = 2, 4, 16
    C_out, K = 8, 3
    L_out = L - K + 1

    key = jax.random.PRNGKey(0)
    kx, kwm, kbm, kwl, kbl, kn = jax.random.split(key, 6)

    x = jax.random.normal(kx, (N, C_in, L), dtype=jnp.float32)
    bound = 1.0 / float(jnp.sqrt(jnp.float32(C_in * K)))
    w_mean = jax.random.uniform(kwm, (C_out, C_in, K), jnp.float32, -bound, bound)
    b_mean = jax.random.uniform(kbm, (C_out,), jnp.float32, -bound, bound)
    w_lv = jax.random.uniform(kwl, (C_out, C_in, K), jnp.float32, -bound, bound)
    b_lv = jax.random.uniform(kbl, (C_out,), jnp.float32, -bound, bound)
    # torch.randn_like(mean) -> deterministic standard-normal noise, output shape.
    noise = jax.random.normal(kn, (N, C_out, L_out), dtype=jnp.float32)

    # Training mode (reparametrization trick).
    out = cnn_reparametrization_trick(x, w_mean, b_mean, w_lv, b_lv, noise,
                                      training=True)
    out = jax.block_until_ready(out)
    ref = _reference(x, w_mean, b_mean, w_lv, b_lv, noise, training=True)
    assert out.shape == (N, C_out, L_out)
    assert jnp.allclose(out, ref, atol=1e-4, rtol=1e-4)

    # Eval mode fast path (mean only).
    out_eval = cnn_reparametrization_trick(x, w_mean, b_mean, w_lv, b_lv,
                                           training=False)
    out_eval = jax.block_until_ready(out_eval)
    ref_eval = _reference(x, w_mean, b_mean, w_lv, b_lv, noise, training=False)
    assert jnp.allclose(out_eval, ref_eval, atol=1e-4, rtol=1e-4)

    print("KERNEL_OK")
</pallas_src>

<mosaic_0001>
module attributes {stable_mosaic.version = 11 : i64} {
  func.func @_train_kernel(%arg0: i32, %arg1: i32, %arg2: memref<1x4x14xf32, #tpu.memory_space<vmem>>, %arg3: memref<1x1x4x2xf32, #tpu.memory_space<vmem>>, %arg4: memref<3x16x4xf32, #tpu.memory_space<vmem>>, %arg5: memref<16x1xf32, #tpu.memory_space<vmem>>, %arg6: memref<1x8x14xf32, #tpu.memory_space<vmem>>, %arg7: memref<1x8x14xf32, #tpu.memory_space<vmem>>) attributes {dimension_semantics = [#tpu.dimension_semantics<parallel>, #tpu.dimension_semantics<parallel>], iteration_bounds = array<i64: 2, 1>, scalar_prefetch = 0 : i64, scratch_operands = 0 : i64, tpu.core_type = #tpu.core_type<tc>, window_params = [{transform_indices = @transform_0, window_bounds = array<i64: 1, 4, 14>}, {transform_indices = @transform_1, window_bounds = array<i64: 1, 1, 4, 2>}, {pipeline_mode = #tpu.pipeline_mode<synchronous>, transform_indices = @transform_2, window_bounds = array<i64: 3, 16, 4>}, {pipeline_mode = #tpu.pipeline_mode<synchronous>, transform_indices = @transform_3, window_bounds = array<i64: 16, 1>}, {transform_indices = @transform_4, window_bounds = array<i64: 1, 8, 14>}, {transform_indices = @transform_5, window_bounds = array<i64: 1, 8, 14>}]} {
    %c0 = arith.constant 0 : index
    %c0_0 = arith.constant 0 : index
    %c0_1 = arith.constant 0 : index
    %0 = vector.load %arg2[%c0, %c0_0, %c0_1] : memref<1x4x14xf32, #tpu.memory_space<vmem>>, vector<1x4x14xf32>
    %1 = vector.shape_cast %0 : vector<1x4x14xf32> to vector<4x14xf32>
    %c0_2 = arith.constant 0 : index
    %c0_3 = arith.constant 0 : index
    %c0_4 = arith.constant 0 : index
    %c0_5 = arith.constant 0 : index
    %2 = vector.load %arg3[%c0_2, %c0_3, %c0_4, %c0_5] : memref<1x1x4x2xf32, #tpu.memory_space<vmem>>, vector<1x1x4x2xf32>
    %3 = vector.shape_cast %2 : vector<1x1x4x2xf32> to vector<4x2xf32>
    %4 = tpu.concatenate %1, %3 in 1 : vector<4x14xf32>, vector<4x2xf32> -> vector<4x16xf32>
    %c0_6 = arith.constant 0 : index
    %c0_7 = arith.constant 0 : index
    %c0_8 = arith.constant 0 : index
    %5 = vector.load %arg4[%c0_6, %c0_7, %c0_8] : memref<3x16x4xf32, #tpu.memory_space<vmem>>, vector<1x16x4xf32>
    %6 = vector.shape_cast %5 : vector<1x16x4xf32> to vector<16x4xf32>
    %7 = vector.extract_strided_slice %4 {offsets = [0, 0], sizes = [4, 14], strides = [1, 1]} : vector<4x16xf32> to vector<4x14xf32>
    %cst = arith.constant dense<0.000000e+00> : vector<16x14xf32>
    %8 = tpu.matmul %6, %7, %cst {dimension_numbers = #tpu.dot_dimension_numbers<[1], [0], [0], [1], [0, 0, 1, 1], [], []>} : vector<16x4xf32>, vector<4x14xf32>, vector<16x14xf32> -> vector<16x14xf32>
    %c1 = arith.constant 1 : index
    %c0_9 = arith.constant 0 : index
    %c0_10 = arith.constant 0 : index
    %9 = vector.load %arg4[%c1, %c0_9, %c0_10] : memref<3x16x4xf32, #tpu.memory_space<vmem>>, vector<1x16x4xf32>
    %10 = vector.shape_cast %9 : vector<1x16x4xf32> to vector<16x4xf32>
    %11 = vector.extract_strided_slice %4 {offsets = [0, 1], sizes = [4, 14], strides = [1, 1]} : vector<4x16xf32> to vector<4x14xf32>
    %cst_11 = arith.constant dense<0.000000e+00> : vector<16x14xf32>
    %12 = tpu.matmul %10, %11, %cst_11 {dimension_numbers = #tpu.dot_dimension_numbers<[1], [0], [0], [1], [0, 0, 1, 1], [], []>} : vector<16x4xf32>, vector<4x14xf32>, vector<16x14xf32> -> vector<16x14xf32>
    %13 = arith.addf %8, %12 : vector<16x14xf32>
    %c2 = arith.constant 2 : index
    %c0_12 = arith.constant 0 : index
    %c0_13 = arith.constant 0 : index
    %14 = vector.load %arg4[%c2, %c0_12, %c0_13] : memref<3x16x4xf32, #tpu.memory_space<vmem>>, vector<1x16x4xf32>
    %15 = vector.shape_cast %14 : vector<1x16x4xf32> to vector<16x4xf32>
    %16 = vector.extract_strided_slice %4 {offsets = [0, 2], sizes = [4, 14], strides = [1, 1]} : vector<4x16xf32> to vector<4x14xf32>
    %cst_14 = arith.constant dense<0.000000e+00> : vector<16x14xf32>
    %17 = tpu.matmul %15, %16, %cst_14 {dimension_numbers = #tpu.dot_dimension_numbers<[1], [0], [0], [1], [0, 0, 1, 1], [], []>} : vector<16x4xf32>, vector<4x14xf32>, vector<16x14xf32> -> vector<16x14xf32>
    %18 = arith.addf %13, %17 : vector<16x14xf32>
    %c0_15 = arith.constant 0 : index
    %c0_16 = arith.constant 0 : index
    %19 = vector.load %arg5[%c0_15, %c0_16] : memref<16x1xf32, #tpu.memory_space<vmem>>, vector<16x1xf32>
    %20 = vector.broadcast %19 : vector<16x1xf32> to vector<16x14xf32>
    %21 = arith.addf %18, %20 : vector<16x14xf32>
    %22 = vector.extract_strided_slice %21 {offsets = [0, 0], sizes = [8, 14], strides = [1, 1]} : vector<16x14xf32> to vector<8x14xf32>
    %23 = vector.extract_strided_slice %21 {offsets = [8, 0], sizes = [8, 14], strides = [1, 1]} : vector<16x14xf32> to vector<8x14xf32>
    %c0_17 = arith.constant 0 : index
    %c0_18 = arith.constant 0 : index
    %c0_19 = arith.constant 0 : index
    %24 = vector.load %arg6[%c0_17, %c0_18, %c0_19] : memref<1x8x14xf32, #tpu.memory_space<vmem>>, vector<1x8x14xf32>
    %25 = vector.shape_cast %24 : vector<1x8x14xf32> to vector<8x14xf32>
    %26 = math.exp %23 : vector<8x14xf32>
    %27 = arith.mulf %25, %26 : vector<8x14xf32>
    %28 = arith.addf %22, %27 : vector<8x14xf32>
    %c0_20 = arith.constant 0 : index
    %c0_21 = arith.constant 0 : index
    %c0_22 = arith.constant 0 : index
    %29 = vector.load %arg7[%c0_20, %c0_21, %c0_22] : memref<1x8x14xf32, #tpu.memory_space<vmem>>, vector<1x8x14xf32>
    %30 = vector.shape_cast %29 : vector<1x8x14xf32> to vector<8x14xf32>
    %31 = vector.shape_cast %28 : vector<8x14xf32> to vector<1x8x14xf32>
    tpu.vector_store %arg7[%c0_20, %c0_21, %c0_22], %31 {strides = array<i32>} : memref<1x8x14xf32, #tpu.memory_space<vmem>>, vector<1x8x14xf32>,
    return
  }
  func.func @transform_0(%arg0: i32, %arg1: i32) -> (i32, i32, i32) {
    %c0_i32 = arith.constant 0 : i32
    %c0_i32_0 = arith.constant 0 : i32
    return %arg0, %c0_i32, %arg1 : i32, i32, i32
  }
  func.func @transform_1(%arg0: i32, %arg1: i32) -> (i32, i32, i32, i32) {
    %c0_i32 = arith.constant 0 : i32
    %c0_i32_0 = arith.constant 0 : i32
    %c0_i32_1 = arith.constant 0 : i32
    return %arg0, %arg1, %c0_i32, %c0_i32_0 : i32, i32, i32, i32
  }
  func.func @transform_2(%arg0: i32, %arg1: i32) -> (i32, i32, i32) {
    %c0_i32 = arith.constant 0 : i32
    %c0_i32_0 = arith.constant 0 : i32
    %c0_i32_1 = arith.constant 0 : i32
    %c0_i32_2 = arith.constant 0 : i32
    return %c0_i32, %c0_i32_0, %c0_i32_1 : i32, i32, i32
  }
  func.func @transform_3(%arg0: i32, %arg1: i32) -> (i32, i32) {
    %c0_i32 = arith.constant 0 : i32
    %c0_i32_0 = arith.constant 0 : i32
    %c0_i32_1 = arith.constant 0 : i32
    return %c0_i32, %c0_i32_0 : i32, i32
  }
  func.func @transform_4(%arg0: i32, %arg1: i32) -> (i32, i32, i32) {
    %c0_i32 = arith.constant 0 : i32
    %c0_i32_0 = arith.constant 0 : i32
    return %arg0, %c0_i32, %arg1 : i32, i32, i32
  }
  func.func @transform_5(%arg0: i32, %arg1: i32) -> (i32, i32, i32) {
    %c0_i32 = arith.constant 0 : i32
    %c0_i32_0 = arith.constant 0 : i32
    return %arg0, %c0_i32, %arg1 : i32, i32, i32
  }
}

</mosaic_0001>

<llo_original>
// kernel: tpu_custom_call.1
$region0: #{tpu_custom_call.1}
  #allocation0 [shape = 'u32[]', space=smem, size = 0x4, offset = 0x4, fixed_abs, tag = 'smem constant byte address 0x4 - core index']
  #allocation1 [shape = 'u32[144,128]{1,0:T(1,128)}', space=vmem, size = 0x12000, scoped, tag = 'internal scratch']
  %s0 = inlined_call_operand.vmem [shape: f32[2,4,14], index: 0, kind: input, shape index: {}]
  %s1 = inlined_call_operand.vmem [shape: f32[2,1,4,2], index: 1, kind: input, shape index: {}]
  %s2 = inlined_call_operand.vmem [shape: f32[3,16,4], index: 2, kind: input, shape index: {}]
  %s3 = inlined_call_operand.vmem [shape: f32[16,1], index: 3, kind: input, shape index: {}]
  %s4 = inlined_call_operand.vmem [shape: f32[2,8,14], index: 4, kind: input, shape index: {}]
  %s5 = inlined_call_operand.hbm [shape: f32[2,8,14], index: 5, kind: output, shape index: {}]
  %s6 = sld [smem:[#allocation0]]
  $region53: #{tpu_custom_call.1} parent=0
    _
  %s8 = ssub.s32 1, %s6
  %s9 = scalar_select 0, %s8, %s6
  $region1: #{tpu_custom_call.1} parent=0
    #allocation2 [shape = 'u8[8192]{0}', space=vmem, size = 0x2000, scoped, tag = 'output window, operand 0']
    #allocation3 [shape = 's32[2]{0}', space=sflag, size = 0x8, scoped, tag = 'scoped memory for tpu_custom_call.1']
    %10 = vsyncpa [#allocation3], 0
    %s11 = scalar_lea.sflag [#allocation3], 1
    %12 = vsyncpa %s11, 0
    loop: start=0, step=1, limit=4
    $region2: #{tpu_custom_call.1} parent=1 // loop_pre_header
      _
    $region3: #{tpu_custom_call.1} parent=1 // loop_header
      %s14 = sphi 0, %s18
      %p15 = scmp.ge.s32.totalorder %s14, 4
      %s21 = sphi 0, %s33
      %s22 = sphi 0, %s29
      %s23 = sphi 0, %s21
      %s24 = sphi 0, %s22
      %s25 = sphi 0, %s23
      %s26 = sphi 0, %s24
      %s38 = sphi 0, %s40
      %s41 = sphi 0, %s38
      %s42 = sphi 0, %s41
      %s58 = sphi 0, %s42
      %s66 = sphi 0, %s68
      %s69 = sphi 0, %s66
      %s70 = sphi 0, %s69
      %s86 = sphi 0, %s70
      %s90 = sphi 0, %s90
      %s92 = sphi 0, %s90
      %s93 = sphi 0, %s92
      %s107 = sphi 0, %s93
      %s111 = sphi 0, %s111
      %s113 = sphi 0, %s111
      %s114 = sphi 0, %s113
      %s128 = sphi 0, %s114
      %s136 = sphi 0, %s138
      %s139 = sphi 0, %s136
      %s140 = sphi 0, %s139
      %s156 = sphi 0, %s140
      %s164 = sphi 0, %s166
      %s167 = sphi 0, %s164
      %s168 = sphi 0, %s167
      %s184 = sphi 0, %s168
    $region4: #{tpu_custom_call.1} parent=1 // loop_header_branch
      %17 = sbr.rel (%p15) target = $region8
    $region5: #{tpu_custom_call.1} parent=1 // loop_body
      %s19 = ssub.s32 %s14, 1
      %s20 = ssub.s32 %s14, 2
      %s27 = sadd.s32 1, %s22
      %p28 = scmp.ge.s32.totalorder %s27, 1
      %s29 = scalar_select %p28, 0, %s27
      %s30 = sadd.s32 1, %s21
      %s31 = scalar_select %p28, %s30, %s21
      %p32 = scmp.ge.s32.totalorder %s31, 2
      %s33 = scalar_select %p32, 0, %s31
      %s34 = ssub.s32 %s21, %s33
      %s35 = ssub.s32 %s22, %s29
      %s36 = sor.u32 %s34, %s35
      %p37 = scmp.eq.s32.totalorder %s36, 0
      %s39 = sadd.s32 %s38, 1
      %s40 = scalar_select %p37, %s38, %s39
      %p43 = pneg %p37
      %p44 = scmp.eq.s32.totalorder %s14, 1
      %p45 = por %p43, %p44
      %p46 = scmp.ne.s32.totalorder %s38, %s41
      %p47 = scmp.eq.s32.totalorder %s14, 0
      %p48 = por %p46, %p47
      %p49 = scmp.ne.s32.totalorder %s38, %s41
      %p50 = scmp.eq.s32.totalorder %s19, 1
      %p51 = por %p49, %p50
      %p52 = scmp.ne.s32.totalorder %s41, %s42
      %p53 = scmp.eq.s32.totalorder %s19, 0
      %p54 = por %p52, %p53
      %p55 = scmp.ne.s32.totalorder %s41, %s42
      %p56 = scmp.eq.s32.totalorder %s20, 1
      %p57 = por %p55, %p56
      %p59 = scmp.ne.s32.totalorder %s42, %s58
      %p60 = scmp.eq.s32.totalorder %s20, 0
      %p61 = por %p59, %p60
      %s62 = ssub.s32 %s21, %s33
      %s63 = ssub.s32 %s22, %s29
      %s64 = sor.u32 %s62, %s63
      %p65 = scmp.eq.s32.totalorder %s64, 0
      %s67 = sadd.s32 %s66, 1
      %s68 = scalar_select %p65, %s66, %s67
      %p71 = pneg %p65
      %p72 = scmp.eq.s32.totalorder %s14, 1
      %p73 = por %p71, %p72
      %p74 = scmp.ne.s32.totalorder %s66, %s69
      %p75 = scmp.eq.s32.totalorder %s14, 0
      %p76 = por %p74, %p75
      %p77 = scmp.ne.s32.totalorder %s66, %s69
      %p78 = scmp.eq.s32.totalorder %s19, 1
      %p79 = por %p77, %p78
      %p80 = scmp.ne.s32.totalorder %s69, %s70
      %p81 = scmp.eq.s32.totalorder %s19, 0
      %p82 = por %p80, %p81
      %p83 = scmp.ne.s32.totalorder %s69, %s70
      %p84 = scmp.eq.s32.totalorder %s20, 1
      %p85 = por %p83, %p84
      %p87 = scmp.ne.s32.totalorder %s70, %s86
      %p88 = scmp.eq.s32.totalorder %s20, 0
      %p89 = por %p87, %p88
      %s91 = sadd.s32 %s90, 1
      %p94 = scmp.eq.s32.totalorder %s14, 1
      %p95 = scmp.ne.s32.totalorder %s90, %s92
      %p96 = scmp.eq.s32.totalorder %s14, 0
      %p97 = por %p95, %p96
      %p98 = scmp.ne.s32.totalorder %s90, %s92
      %p99 = scmp.eq.s32.totalorder %s19, 1
      %p100 = por %p98, %p99
      %p101 = scmp.ne.s32.totalorder %s92, %s93
      %p102 = scmp.eq.s32.totalorder %s19, 0
      %p103 = por %p101, %p102
      %p104 = scmp.ne.s32.totalorder %s92, %s93
      %p105 = scmp.eq.s32.totalorder %s20, 1
      %p106 = por %p104, %p105
      %p108 = scmp.ne.s32.totalorder %s93, %s107
      %p109 = scmp.eq.s32.totalorder %s20, 0
      %p110 = por %p108, %p109
      %s112 = sadd.s32 %s111, 1
      %p115 = scmp.eq.s32.totalorder %s14, 1
      %p116 = scmp.ne.s32.totalorder %s111, %s113
      %p117 = scmp.eq.s32.totalorder %s14, 0
      %p118 = por %p116, %p117
      %p119 = scmp.ne.s32.totalorder %s111, %s113
      %p120 = scmp.eq.s32.totalorder %s19, 1
      %p121 = por %p119, %p120
      %p122 = scmp.ne.s32.totalorder %s113, %s114
      %p123 = scmp.eq.s32.totalorder %s19, 0
      %p124 = por %p122, %p123
      %p125 = scmp.ne.s32.totalorder %s113, %s114
      %p126 = scmp.eq.s32.totalorder %s20, 1
      %p127 = por %p125, %p126
      %p129 = scmp.ne.s32.totalorder %s114, %s128
      %p130 = scmp.eq.s32.totalorder %s20, 0
      %p131 = por %p129, %p130
      %s132 = ssub.s32 %s21, %s33
      %s133 = ssub.s32 %s22, %s29
      %s134 = sor.u32 %s132, %s133
      %p135 = scmp.eq.s32.totalorder %s134, 0
      %s137 = sadd.s32 %s136, 1
      %s138 = scalar_select %p135, %s136, %s137
      %p141 = pneg %p135
      %p142 = scmp.eq.s32.totalorder %s14, 1
      %p143 = por %p141, %p142
      %p144 = scmp.ne.s32.totalorder %s136, %s139
      %p145 = scmp.eq.s32.totalorder %s14, 0
      %p146 = por %p144, %p145
      %p147 = scmp.ne.s32.totalorder %s136, %s139
      %p148 = scmp.eq.s32.totalorder %s19, 1
      %p149 = por %p147, %p148
      %p150 = scmp.ne.s32.totalorder %s139, %s140
      %p151 = scmp.eq.s32.totalorder %s19, 0
      %p152 = por %p150, %p151
      %p153 = scmp.ne.s32.totalorder %s139, %s140
      %p154 = scmp.eq.s32.totalorder %s20, 1
      %p155 = por %p153, %p154
      %p157 = scmp.ne.s32.totalorder %s140, %s156
      %p158 = scmp.eq.s32.totalorder %s20, 0
      %p159 = por %p157, %p158
      %s160 = ssub.s32 %s21, %s33
      %s161 = ssub.s32 %s22, %s29
      %s162 = sor.u32 %s160, %s161
      %p163 = scmp.eq.s32.totalorder %s162, 0
      %s165 = sadd.s32 %s164, 1
      %s166 = scalar_select %p163, %s164, %s165
      %p169 = pneg %p163
      %p170 = scmp.eq.s32.totalorder %s14, 1
      %p171 = por %p169, %p170
      %p172 = scmp.ne.s32.totalorder %s164, %s167
      %p173 = scmp.eq.s32.totalorder %s14, 0
      %p174 = por %p172, %p173
      %p175 = scmp.ne.s32.totalorder %s164, %s167
      %p176 = scmp.eq.s32.totalorder %s19, 1
      %p177 = por %p175, %p176
      %p178 = scmp.ne.s32.totalorder %s167, %s168
      %p179 = scmp.eq.s32.totalorder %s19, 0
      %p180 = por %p178, %p179
      %p181 = scmp.ne.s32.totalorder %s167, %s168
      %p182 = scmp.eq.s32.totalorder %s20, 1
      %p183 = por %p181, %p182
      %p185 = scmp.ne.s32.totalorder %s168, %s184
      %p186 = scmp.eq.s32.totalorder %s20, 0
      %p187 = por %p185, %p186
      %p188 = scmp.le.s32.totalorder 1, %s14
      %p189 = scmp.lt.s32.totalorder %s14, 3
      %p190 = pnand %p188, %p189
      %p191 = pneg %p190
      // Predicated region
      $region9: #{tpu_custom_call.1} parent=5 // pred_check
        _
      $region10: #{tpu_custom_call.1} parent=5 // pred_check_branch
        %193 = sbr.rel (%p190) target = $region12
      $region11: #{tpu_custom_call.1} parent=5 // pred_region
        %s194 = ssub.s32 %s14, 1
        // Predicated region
        $region13: #{tpu_custom_call.1} parent=11 // pred_check
          %p195 = pneg %p103
        $region14: #{tpu_custom_call.1} parent=11 // pred_check_branch
          %197 = sbr.rel (%p195) target = $region16
        $region15: #{tpu_custom_call.1} parent=11 // pred_region
          _
        $region16: #{tpu_custom_call.1} parent=11 // pred_fallthru
          _
        // Predicated region
        $region17: #{tpu_custom_call.1} parent=11 // pred_check
          %p198 = pneg %p124
        $region18: #{tpu_custom_call.1} parent=11 // pred_check_branch
          %200 = sbr.rel (%p198) target = $region20
        $region19: #{tpu_custom_call.1} parent=11 // pred_region
          _
        $region20: #{tpu_custom_call.1} parent=11 // pred_fallthru
          _
      $region12: #{tpu_custom_call.1} parent=5 // pred_fallthru
        _
      %p201 = scmp.lt.s32.totalorder %s14, 2
      // Predicated region
      $region21: #{tpu_custom_call.1} parent=5 // pred_check
        %p202 = pneg %p201
      $region22: #{tpu_custom_call.1} parent=5 // pred_check_branch
        %204 = sbr.rel (%p202) target = $region24
      $region23: #{tpu_custom_call.1} parent=5 // pred_region
        // Predicated region
        $region25: #{tpu_custom_call.1} parent=23 // pred_check
          %p205 = pneg %p48
        $region26: #{tpu_custom_call.1} parent=23 // pred_check_branch
          %207 = sbr.rel (%p205) target = $region28
        $region27: #{tpu_custom_call.1} parent=23 // pred_region
          %p208 = scmp.lt.s32.totalorder %s21, 1
          %s209 = scalar_select %p208, %s21, 1
          %p210 = scmp.lt.s32.totalorder %s22, 0
          %s211 = scalar_select %p210, %s22, 0
          %s212 = sadd.s32 %s211, %s209
          %s213 = smul.addr %s212, 4
          %s214 = scalar_lea.vmem %s0, %s213
        $region28: #{tpu_custom_call.1} parent=23 // pred_fallthru
          _
        // Predicated region
        $region29: #{tpu_custom_call.1} parent=23 // pred_check
          %p215 = pneg %p76
        $region30: #{tpu_custom_call.1} parent=23 // pred_check_branch
          %217 = sbr.rel (%p215) target = $region32
        $region31: #{tpu_custom_call.1} parent=23 // pred_region
          %p218 = scmp.lt.s32.totalorder %s21, 1
          %s219 = scalar_select %p218, %s21, 1
          %p220 = scmp.lt.s32.totalorder %s22, 0
          %s221 = scalar_select %p220, %s22, 0
          %s222 = sadd.s32 %s221, %s219
          %s223 = smul.addr %s222, 4
          %s224 = scalar_lea.vmem %s1, %s223
        $region32: #{tpu_custom_call.1} parent=23 // pred_fallthru
          _
        // Predicated region
        $region33: #{tpu_custom_call.1} parent=23 // pred_check
          %p225 = pneg %p146
        $region34: #{tpu_custom_call.1} parent=23 // pred_check_branch
          %227 = sbr.rel (%p225) target = $region36
        $region35: #{tpu_custom_call.1} parent=23 // pred_region
          %p228 = scmp.lt.s32.totalorder %s21, 1
          %s229 = scalar_select %p228, %s21, 1
          %p230 = scmp.lt.s32.totalorder %s22, 0
          %s231 = scalar_select %p230, %s22, 0
          %s232 = sadd.s32 %s231, %s229
          %s233 = smul.addr %s232, 8
          %s234 = scalar_lea.vmem %s4, %s233
        $region36: #{tpu_custom_call.1} parent=23 // pred_fallthru
          _
      $region24: #{tpu_custom_call.1} parent=5 // pred_fallthru
        _
      %p235 = scmp.le.s32.totalorder 1, %s14
      %p236 = scmp.lt.s32.totalorder %s14, 3
      %p237 = pnand %p235, %p236
      %p238 = pneg %p237
      // Predicated region
      $region37: #{tpu_custom_call.1} parent=5 // pred_check
        _
      $region38: #{tpu_custom_call.1} parent=5 // pred_check_branch
        %240 = sbr.rel (%p237) target = $region40
      $region39: #{tpu_custom_call.1} parent=5 // pred_region
        %s241 = ssub.s32 %s14, 1
        %p242 = scmp.lt.s32.totalorder %s23, 1
        %s243 = scalar_select %p242, %s23, 1
        %p244 = scmp.lt.s32.totalorder %s24, 0
        %s245 = scalar_select %p244, %s24, 0
        %s246 = sadd.s32 %s245, %s243
        %s247 = smul.addr %s246, 4
        %s248 = scalar_lea.vmem %s0, %s247
        %p249 = pneg %p54
        %p250 = pneg %p51
        %p251 = scmp.lt.s32.totalorder %s23, 1
        %s252 = scalar_select %p251, %s23, 1
        %p253 = scmp.lt.s32.totalorder %s24, 0
        %s254 = scalar_select %p253, %s24, 0
        %s255 = sadd.s32 %s254, %s252
        %s256 = smul.addr %s255, 4
        %s257 = scalar_lea.vmem %s1, %s256
        %p258 = pneg %p82
        %p259 = pneg %p79
        %p260 = pneg %p103
        %p261 = pneg %p100
        %p262 = pneg %p124
        %p263 = pneg %p121
        %p264 = scmp.lt.s32.totalorder %s23, 1
        %s265 = scalar_select %p264, %s23, 1
        %p266 = scmp.lt.s32.totalorder %s24, 0
        %s267 = scalar_select %p266, %s24, 0
        %s268 = sadd.s32 %s267, %s265
        %s269 = smul.addr %s268, 8
        %s270 = scalar_lea.vmem %s4, %s269
        %p271 = pneg %p152
        %p272 = pneg %p149
        %p273 = pneg %p180
        %p274 = pneg %p177
        %s275 = sand.u32 %s167, 1
        %s276 = scalar_lea.sflag [#allocation3], %s275
        %s277 = sand.u32 %s167, 1
        %s278 = smul.addr %s277, 8
        %s279 = scalar_lea.vmem [#allocation2], %s278
        %p280 = scmp.lt.s32.totalorder %s23, 1
        %s281 = scalar_select %p280, %s23, 1
        %p282 = scmp.lt.s32.totalorder %s24, 0
        %s283 = scalar_select %p282, %s24, 0
        %s284 = sadd.s32 %s283, %s281
        %s285 = smul.addr %s284, 4
        %s286 = scalar_lea.vmem %s0, %s285
        %p287 = scmp.lt.s32.totalorder %s23, 1
        %s288 = scalar_select %p287, %s23, 1
        %p289 = scmp.lt.s32.totalorder %s24, 0
        %s290 = scalar_select %p289, %s24, 0
        %s291 = sadd.s32 %s290, %s288
        %s292 = smul.addr %s291, 4
        %s293 = scalar_lea.vmem %s1, %s292
        %p294 = scmp.lt.s32.totalorder %s23, 1
        %s295 = scalar_select %p294, %s23, 1
        %p296 = scmp.lt.s32.totalorder %s24, 0
        %s297 = scalar_select %p296, %s24, 0
        %s298 = sadd.s32 %s297, %s295
        %s299 = smul.addr %s298, 8
        %s300 = scalar_lea.vmem %s4, %s299
        %v301 = vld [vmem:[%s286] sm:$0xf]
        %v302 = vld [vmem:[%s293] sm:$0xf]
        %304 = vrot.lane.b32.xlu0 %v302, 14
        %v305 = vpop.permute.xlu0 %304
        %vm307 = vcmask 113664
        %v308 = vsel %vm307, %v301, %v305
        %v309 = vld [vmem:[%s2] sm:$0xff]
        %v310 = vld [vmem:[%s2 + $0x8] sm:$0xff]
        %s311 = scalar_lea.vmem %s2, 16
        %v312 = vld [vmem:[%s311] sm:$0xff]
        %v313 = vld [vmem:[%s311 + $0x8] sm:$0xff]
        %315 = vrot.lane.b32.xlu0 %v308, 127
        %v316 = vpop.permute.xlu0 %315
        %vm317 = vcmask 31744
        %v319 = vsel %vm317, %v312, 0
        %v322 = vsel %vm317, %v313, 0
        %vm324 = vcmask 1043456
        %v325 = vsel %vm324, %v316, 0
        %327 = vmatprep.subr.mxu0 0.0
        %328 = vmatpush1.msra.mxu0 0.0
        %329 = vmatprep.subr.mxu0 0.0
        %330 = vmatpush1.msra.mxu0 0.0
        %331 = vmatprep.subr.mxu0 0.0
        %332 = vmatpush1.msra.mxu0 0.0
        %333 = vmatprep.subr.mxu0 0.0
        %334 = vmatpush1.msra.mxu0 0.0
        %335 = vmatprep.subr.mxu0 0.0
        %336 = vmatpush1.msra.mxu0 0.0
        %337 = vmatprep.subr.mxu0 0.0
        %338 = vmatpush1.msra.mxu0 0.0
        %339 = vmatprep.subr.mxu0 0.0
        %340 = vmatpush1.msra.mxu0 0.0
        %341 = vmatprep.subr.mxu0 0.0
        %342 = vmatpush1.msra.mxu0 0.0
        %343 = vmatprep.subr.mxu0 0.0
        %344 = vmatpush1.msra.mxu0 0.0
        %345 = vmatprep.subr.mxu0 0.0
        %346 = vmatpush1.msra.mxu0 0.0
        %347 = vmatprep.subr.mxu0 0.0
        %348 = vmatpush1.msra.mxu0 0.0
        %349 = vmatprep.subr.mxu0 0.0
        %350 = vmatpush1.msra.mxu0 0.0
        %351 = vmatprep.subr.mxu0 0.0
        %352 = vmatpush1.msra.mxu0 0.0
        %353 = vmatprep.subr.mxu0 0.0
        %354 = vmatpush1.msra.mxu0 0.0
        %355 = vmatprep.subr.mxu0 0.0
        %356 = vmatpush1.msra.mxu0 0.0
        %357 = vmatprep.subr.mxu0 0.0
        %358 = vmatpush1.msra.mxu0 %v325
        %359 = vmatprep.subr.mxu0 0.0
        %360 = vmatpush2.msra.mxu0 0.0
        %361 = vmatprep.subr.mxu0 0.0
        %362 = vmatpush2.msra.mxu0 0.0
        %363 = vmatprep.subr.mxu0 0.0
        %364 = vmatpush2.msra.mxu0 0.0
        %365 = vmatprep.subr.mxu0 0.0
        %366 = vmatpush2.msra.mxu0 0.0
        %367 = vmatprep.subr.mxu0 0.0
        %368 = vmatpush2.msra.mxu0 0.0
        %369 = vmatprep.subr.mxu0 0.0
        %370 = vmatpush2.msra.mxu0 0.0
        %371 = vmatprep.subr.mxu0 0.0
        %372 = vmatpush2.msra.mxu0 0.0
        %373 = vmatprep.subr.mxu0 0.0
        %374 = vmatpush2.msra.mxu0 0.0
        %375 = vmatprep.subr.mxu0 0.0
        %376 = vmatpush2.msra.mxu0 0.0
        %377 = vmatprep.subr.mxu0 0.0
        %378 = vmatpush2.msra.mxu0 0.0
        %379 = vmatprep.subr.mxu0 0.0
        %380 = vmatpush2.msra.mxu0 0.0
        %381 = vmatprep.subr.mxu0 0.0
        %382 = vmatpush2.msra.mxu0 0.0
        %383 = vmatprep.subr.mxu0 0.0
        %384 = vmatpush2.msra.mxu0 0.0
        %385 = vmatprep.subr.mxu0 0.0
        %386 = vmatpush2.msra.mxu0 0.0
        %387 = vmatprep.subr.mxu0 0.0
        %388 = vmatpush2.msra.mxu0 0.0
        %389 = vmatprep.subr.mxu0 0.0
        %390 = vmatpush2.msra.mxu0 0.0
        %391 = vmatprep.mubr.f32.mxu0 0.0
        %392 = vmatmul.mubr.f32.gmra.mxu0 %v319
        %v393 = vpop.f32.mrf.mxu0
        %v394 = vadd.f32 0.0, %v393
        %v395 = vpop.f32.mrf.mxu0
        %396 = vmatprep.mubr.f32.mxu0 0.0
        %397 = vmatmul.mubr.f32.gmra.mxu0 %v322
        %v398 = vpop.f32.mrf.mxu0
        %v399 = vadd.f32 0.0, %v398
        %v400 = vpop.f32.mrf.mxu0
        %401 = vdwg.mxu0
        %v403 = vsel %vm317, %v309, 0
        %v406 = vsel %vm317, %v310, 0
        %v408 = vsel %vm324, %v308, 0
        %410 = vmatprep.subr.mxu0 0.0
        %411 = vmatpush1.msra.mxu0 0.0
        %412 = vmatprep.subr.mxu0 0.0
        %413 = vmatpush1.msra.mxu0 0.0
        %414 = vmatprep.subr.mxu0 0.0
        %415 = vmatpush1.msra.mxu0 0.0
        %416 = vmatprep.subr.mxu0 0.0
        %417 = vmatpush1.msra.mxu0 0.0
        %418 = vmatprep.subr.mxu0 0.0
        %419 = vmatpush1.msra.mxu0 0.0
        %420 = vmatprep.subr.mxu0 0.0
        %421 = vmatpush1.msra.mxu0 0.0
        %422 = vmatprep.subr.mxu0 0.0
        %423 = vmatpush1.msra.mxu0 0.0
        %424 = vmatprep.subr.mxu0 0.0
        %425 = vmatpush1.msra.mxu0 0.0
        %426 = vmatprep.subr.mxu0 0.0
        %427 = vmatpush1.msra.mxu0 0.0
        %428 = vmatprep.subr.mxu0 0.0
        %429 = vmatpush1.msra.mxu0 0.0
        %430 = vmatprep.subr.mxu0 0.0
        %431 = vmatpush1.msra.mxu0 0.0
        %432 = vmatprep.subr.mxu0 0.0
        %433 = vmatpush1.msra.mxu0 0.0
        %434 = vmatprep.subr.mxu0 0.0
        %435 = vmatpush1.msra.mxu0 0.0
        %436 = vmatprep.subr.mxu0 0.0
        %437 = vmatpush1.msra.mxu0 0.0
        %438 = vmatprep.subr.mxu0 0.0
        %439 = vmatpush1.msra.mxu0 0.0
        %440 = vmatprep.subr.mxu0 0.0
        %441 = vmatpush1.msra.mxu0 %v408
        %442 = vmatprep.subr.mxu0 0.0
        %443 = vmatpush2.msra.mxu0 0.0
        %444 = vmatprep.subr.mxu0 0.0
        %445 = vmatpush2.msra.mxu0 0.0
        %446 = vmatprep.subr.mxu0 0.0
        %447 = vmatpush2.msra.mxu0 0.0
        %448 = vmatprep.subr.mxu0 0.0
        %449 = vmatpush2.msra.mxu0 0.0
        %450 = vmatprep.subr.mxu0 0.0
        %451 = vmatpush2.msra.mxu0 0.0
        %452 = vmatprep.subr.mxu0 0.0
        %453 = vmatpush2.msra.mxu0 0.0
        %454 = vmatprep.subr.mxu0 0.0
        %455 = vmatpush2.msra.mxu0 0.0
        %456 = vmatprep.subr.mxu0 0.0
        %457 = vmatpush2.msra.mxu0 0.0
        %458 = vmatprep.subr.mxu0 0.0
        %459 = vmatpush2.msra.mxu0 0.0
        %460 = vmatprep.subr.mxu0 0.0
        %461 = vmatpush2.msra.mxu0 0.0
        %462 = vmatprep.subr.mxu0 0.0
        %463 = vmatpush2.msra.mxu0 0.0
        %464 = vmatprep.subr.mxu0 0.0
        %465 = vmatpush2.msra.mxu0 0.0
        %466 = vmatprep.subr.mxu0 0.0
        %467 = vmatpush2.msra.mxu0 0.0
        %468 = vmatprep.subr.mxu0 0.0
        %469 = vmatpush2.msra.mxu0 0.0
        %470 = vmatprep.subr.mxu0 0.0
        %471 = vmatpush2.msra.mxu0 0.0
        %472 = vmatprep.subr.mxu0 0.0
        %473 = vmatpush2.msra.mxu0 0.0
        %474 = vmatprep.mubr.f32.mxu0 0.0
        %475 = vmatmul.mubr.f32.gmra.mxu0 %v403
        %v476 = vpop.f32.mrf.mxu0
        %v477 = vadd.f32 %v394, %v476
        %v478 = vpop.f32.mrf.mxu0
        %479 = vmatprep.mubr.f32.mxu0 0.0
        %480 = vmatmul.mubr.f32.gmra.mxu0 %v406
        %v481 = vpop.f32.mrf.mxu0
        %v482 = vadd.f32 %v399, %v481
        %v483 = vpop.f32.mrf.mxu0
        %484 = vdwg.mxu0
        %s485 = scalar_lea.vmem %s2, 32
        %v486 = vld [vmem:[%s485] sm:$0xff]
        %v487 = vld [vmem:[%s485 + $0x8] sm:$0xff]
        %488 = vrot.lane.b32.xlu0 %v308, 126
        %v489 = vpop.permute.xlu0 %488
        %v491 = vsel %vm317, %v486, 0
        %v494 = vsel %vm317, %v487, 0
        %v496 = vsel %vm324, %v489, 0
        %498 = vmatprep.subr.mxu0 0.0
        %499 = vmatpush1.msra.mxu0 0.0
        %500 = vmatprep.subr.mxu0 0.0
        %501 = vmatpush1.msra.mxu0 0.0
        %502 = vmatprep.subr.mxu0 0.0
        %503 = vmatpush1.msra.mxu0 0.0
        %504 = vmatprep.subr.mxu0 0.0
        %505 = vmatpush1.msra.mxu0 0.0
        %506 = vmatprep.subr.mxu0 0.0
        %507 = vmatpush1.msra.mxu0 0.0
        %508 = vmatprep.subr.mxu0 0.0
        %509 = vmatpush1.msra.mxu0 0.0
        %510 = vmatprep.subr.mxu0 0.0
        %511 = vmatpush1.msra.mxu0 0.0
        %512 = vmatprep.subr.mxu0 0.0
        %513 = vmatpush1.msra.mxu0 0.0
        %514 = vmatprep.subr.mxu0 0.0
        %515 = vmatpush1.msra.mxu0 0.0
        %516 = vmatprep.subr.mxu0 0.0
        %517 = vmatpush1.msra.mxu0 0.0
        %518 = vmatprep.subr.mxu0 0.0
        %519 = vmatpush1.msra.mxu0 0.0
        %520 = vmatprep.subr.mxu0 0.0
        %521 = vmatpush1.msra.mxu0 0.0
        %522 = vmatprep.subr.mxu0 0.0
        %523 = vmatpush1.msra.mxu0 0.0
        %524 = vmatprep.subr.mxu0 0.0
        %525 = vmatpush1.msra.mxu0 0.0
        %526 = vmatprep.subr.mxu0 0.0
        %527 = vmatpush1.msra.mxu0 0.0
        %528 = vmatprep.subr.mxu0 0.0
        %529 = vmatpush1.msra.mxu0 %v496
        %530 = vmatprep.subr.mxu0 0.0
        %531 = vmatpush2.msra.mxu0 0.0
        %532 = vmatprep.subr.mxu0 0.0
        %533 = vmatpush2.msra.mxu0 0.0
        %534 = vmatprep.subr.mxu0 0.0
        %535 = vmatpush2.msra.mxu0 0.0
        %536 = vmatprep.subr.mxu0 0.0
        %537 = vmatpush2.msra.mxu0 0.0
        %538 = vmatprep.subr.mxu0 0.0
        %539 = vmatpush2.msra.mxu0 0.0
        %540 = vmatprep.subr.mxu0 0.0
        %541 = vmatpush2.msra.mxu0 0.0
        %542 = vmatprep.subr.mxu0 0.0
        %543 = vmatpush2.msra.mxu0 0.0
        %544 = vmatprep.subr.mxu0 0.0
        %545 = vmatpush2.msra.mxu0 0.0
        %546 = vmatprep.subr.mxu0 0.0
        %547 = vmatpush2.msra.mxu0 0.0
        %548 = vmatprep.subr.mxu0 0.0
        %549 = vmatpush2.msra.mxu0 0.0
        %550 = vmatprep.subr.mxu0 0.0
        %551 = vmatpush2.msra.mxu0 0.0
        %552 = vmatprep.subr.mxu0 0.0
        %553 = vmatpush2.msra.mxu0 0.0
        %554 = vmatprep.subr.mxu0 0.0
        %555 = vmatpush2.msra.mxu0 0.0
        %556 = vmatprep.subr.mxu0 0.0
        %557 = vmatpush2.msra.mxu0 0.0
        %558 = vmatprep.subr.mxu0 0.0
        %559 = vmatpush2.msra.mxu0 0.0
        %560 = vmatprep.subr.mxu0 0.0
        %561 = vmatpush2.msra.mxu0 0.0
        %562 = vmatprep.mubr.f32.mxu0 0.0
        %563 = vmatmul.mubr.f32.gmra.mxu0 %v491
        %v564 = vpop.f32.mrf.mxu0
        %v565 = vadd.f32 0.0, %v564
        %v566 = vpop.f32.mrf.mxu0
        %567 = vmatprep.mubr.f32.mxu0 0.0
        %568 = vmatmul.mubr.f32.gmra.mxu0 %v494
        %v569 = vpop.f32.mrf.mxu0
        %v570 = vadd.f32 0.0, %v569
        %v571 = vpop.f32.mrf.mxu0
        %572 = vdwg.mxu0
        %v573 = vadd.f32 %v477, %v565
        %v574 = vadd.f32 %v482, %v570
        %v575 = vld [vmem:[%s3] sm:$0xff]
        %v576 = vld [vmem:[%s3 + $0x8] sm:$0xff]
        %578 = vset.pattern.permute.xlu0 0
        %579 = vperm.xlu0 %578, %v575
        %v580 = vpop.permute.xlu0 %579
        %583 = vset.pattern.permute.xlu0 0
        %584 = vperm.xlu0 %583, %v576
        %v585 = vpop.permute.xlu0 %584
        %v587 = vadd.f32 %v573, %v580
        %v588 = vadd.f32 %v574, %v585
        %v589 = vld [vmem:[%s300] sm:$0xff]
        %v590 = vmul.f32 %v588, 1.442695
        %v591 = vpow.pop %v590
        %v592 = vmul.f32 %v589, %v591
        %v593 = vadd.f32 %v587, %v592
        %594 = vst.msk [vmem:[%s279] sm:$0xff] %vm307, %v593
        %s595 = sand.u32 %s167, 1
        %s596 = scalar_lea.sflag [#allocation3], %s595
        %s597 = sand.u32 %s167, 1
        %s598 = smul.addr %s597, 8
        %s599 = scalar_lea.vmem [#allocation2], %s598
        // Predicated region
        $region41: #{tpu_custom_call.1} parent=39 // pred_check
          %p600 = pneg %p177
        $region42: #{tpu_custom_call.1} parent=39 // pred_check_branch
          %602 = sbr.rel (%p600) target = $region44
        $region43: #{tpu_custom_call.1} parent=39 // pred_region
          %s604 = ssub.s32 128, 128
          %605 = vsyncadd %s596, %s604
          %s606 = sadd.s32 %s24, %s23
          %s607 = smul.addr %s606, 128
          %s608 = scalar_lea.hbm %s5, %s607
          %s610 = sshll.u32 %s599, 4
          %s611 = int_to_ptr.vmem [resolvable:$true] %s610
          %613 = dma.vmem_to_hbm [thread:$0]  %s611, 128, %s608, %s596
        $region44: #{tpu_custom_call.1} parent=39 // pred_fallthru
          _
      $region40: #{tpu_custom_call.1} parent=5 // pred_fallthru
        _
      %p614 = scmp.le.s32.totalorder 2, %s14
      // Predicated region
      $region45: #{tpu_custom_call.1} parent=5 // pred_check
        %p615 = pneg %p614
      $region46: #{tpu_custom_call.1} parent=5 // pred_check_branch
        %617 = sbr.rel (%p615) target = $region48
      $region47: #{tpu_custom_call.1} parent=5 // pred_region
        %s618 = ssub.s32 %s14, 2
        // Predicated region
        $region49: #{tpu_custom_call.1} parent=47 // pred_check
          %p619 = pneg %p183
        $region50: #{tpu_custom_call.1} parent=47 // pred_check_branch
          %621 = sbr.rel (%p619) target = $region52
        $region51: #{tpu_custom_call.1} parent=47 // pred_region
          %s622 = sand.u32 %s168, 1
          %s623 = scalar_lea.sflag [#allocation3], %s622
          %s624 = sand.u32 %s168, 1
          %s625 = smul.addr %s624, 8
          %s626 = scalar_lea.vmem [#allocation2], %s625
          %627 = dma.done %s623, 128
        $region52: #{tpu_custom_call.1} parent=47 // pred_fallthru
          _
      $region48: #{tpu_custom_call.1} parent=5 // pred_fallthru
        _
    $region6: #{tpu_custom_call.1} parent=1 // loop_footer
      %s18 = sadd.s32 1, %s14
    $region7: #{tpu_custom_call.1} parent=1 // loop_footer_branch
      %13 = sbr.rel target = $region3
    $region8: #{tpu_custom_call.1} parent=1 // loop_exit
      _
    %628 = vsyncpa [#allocation3], 1
    %s629 = scalar_lea.sflag [#allocation3], 1
    %630 = vsyncpa %s629, 1

</llo_original>
